<compile_context>
chip_gen: v7x
topology: tpu7x:2x2x1
jax: 0.10.0
libtpu: 0.0.40
codegen_flags: <defaults>
</compile_context>

<pallas_src>
import functools

import numpy as np
import jax
import jax.numpy as jnp
from jax.experimental import pallas as pl
from jax.experimental.pallas import tpu as pltpu

PAD = 3


def _shift_kernel(offs_ref, x_ref, o_ref, pad_scr, *, B, pad, C, H, W):
    """One grid step = B consecutive samples.

    offs_ref: SMEM (2*N,) int32, per-sample [row_start, col_start] into the
              (virtual) replicate-padded image, each in [0, 2*pad].
    x_ref   : VMEM input block (B, C, H, W) f32, auto-pipelined (contiguous DMA).
    o_ref   : VMEM output block (B, C, H, W) f32, auto-pipelined.
    pad_scr : VMEM scratch (2, C, H+2*pad, W+2*pad) f32 (ping-pong across samples).
    """
    Hp = H + 2 * pad
    Wp = W + 2 * pad
    i = pl.program_id(0)
    n_bits = (2 * pad).bit_length()          # static: shifts live in [0, 2*pad]

    for b in range(B):                       # B is small & static -> unrolled
        n = i * B + b
        sy = offs_ref[2 * n]                 # row start into padded image
        sx = offs_ref[2 * n + 1]             # col start into padded image
        xb = x_ref[b]                        # (C, H, W)

        # --- Fused replicate pad, built in VMEM (no padded copy in HBM). ---
        top = jnp.broadcast_to(xb[:, :1, :], (C, pad, W))
        bot = jnp.broadcast_to(xb[:, H - 1:, :], (C, pad, W))
        rows = jnp.concatenate([top, xb, bot], axis=1)             # (C, Hp, W)
        left = jnp.broadcast_to(rows[:, :, :1], (C, Hp, pad))
        right = jnp.broadcast_to(rows[:, :, W - 1:], (C, Hp, pad))
        padded = jnp.concatenate([left, rows, right], axis=2)      # (C, Hp, Wp)

        slot = b & 1                          # ping-pong so adjacent samples overlap
        pad_scr[slot] = padded

        # --- Row crop: dynamic-start sublane slice (well supported). ---
        y = pad_scr[slot, :, pl.ds(sy, H), :]                      # (C, H, Wp)

        # --- Column crop [sx, sx+W): binary-decomposed static cyclic lane
        # shifts, each enabled by one bit of sx.  Cyclic shifts compose exactly
        # and columns j < W never see wrapped data since sx <= 2*pad = Wp - W.
        # Masks are built from a lane iota vs. an int scalar (no i1 broadcasts,
        # no dynamic lane indexing). ---
        for j in range(n_bits):
            k = 1 << j
            bit = (sx >> j) & 1                                    # scalar 0/1
            thr = Wp * (1 - bit)                                   # 0 -> take, Wp -> keep
            take = jax.lax.broadcasted_iota(jnp.int32, (C, H, Wp), 2) >= thr
            shifted = jnp.concatenate([y[:, :, k:], y[:, :, :k]], axis=2)
            y = jnp.where(take, shifted, y)

        o_ref[b] = y[:, :, :W]


def _vmem_budget_bytes():
    """Generation-aware scoped-VMEM budget with headroom (v7x has 64 MiB/TC)."""
    try:
        cap = int(pltpu.get_tpu_info().vmem_capacity_bytes)
    except Exception:
        cap = 64 * 1024 * 1024               # conservative: v7x per-TensorCore
    return int(min(cap * 3 // 4, 48 * 1024 * 1024))


def _pick_block(N, C, H, W, pad, budget):
    """Largest divisor of N whose pipelined footprint fits the VMEM budget,
    keeping >= 2 grid steps so both v7x TensorCores (and the pipeline) get work.
    """
    h_t = ((H + 7) // 8) * 8                 # sublane tiling
    w_t = ((W + 127) // 128) * 128           # lane tiling
    per_sample = C * h_t * w_t * 4           # one in or out sample block in VMEM
    hp_t = ((H + 2 * pad + 7) // 8) * 8
    wp_t = ((W + 2 * pad + 127) // 128) * 128
    scratch = 2 * C * hp_t * wp_t * 4        # ping-pong replicate-pad scratch
    slack = 2 * 1024 * 1024                  # live values / compiler internals

    best = 1
    for cand in range(1, min(N, 32) + 1):
        if N % cand:
            continue                         # TODO(synk): masked tail so prime N keeps B optimal
        if N >= 2 and N // cand < 2:
            continue                         # keep >= 2 grid steps
        # 2x double-buffered input + 2x double-buffered output + slack per sample
        if 5 * cand * per_sample + scratch + slack <= budget:
            best = cand
    need = 5 * best * per_sample + scratch + slack
    return best, need


def random_shifts_aug(x, key, pad=PAD):
    """JAX/Pallas equivalent of RandomShiftsAug.forward (NCHW in, NCHW f32 out).

    Returns (augmented, shift_int); shift_int[:, 0] is the x (column) shift and
    shift_int[:, 1] the y (row) shift, uniform on [0, 2*pad] like torch.randint.
    """
    # TODO(synk): for uint8 inputs the f32 cast could be fused in-kernel to halve
    # the read traffic; the torch module casts to float first, so we match that.
    x = x.astype(jnp.float32)
    N, C, H, W = x.shape
    assert H == W
    shift_int = jax.random.randint(key, (N, 2), 0, 2 * pad + 1)    # [x, y]
    if pad == 0:
        return x, shift_int

    # Per-sample [row_start, col_start] into the replicate-padded image
    # (torch grid column order is [shift_x, shift_y]).
    offs = jnp.stack([shift_int[:, 1], shift_int[:, 0]], axis=-1)
    offs_flat = offs.reshape(-1).astype(jnp.int32)

    budget = _vmem_budget_bytes()
    B, vmem_need = _pick_block(N, C, H, W, pad, budget)
    vmem_limit = int(max(budget, vmem_need))

    grid_spec = pltpu.PrefetchScalarGridSpec(
        num_scalar_prefetch=1,
        grid=(N // B,),
        in_specs=[pl.BlockSpec((B, C, H, W), lambda i, offs_smem: (i, 0, 0, 0))],
        out_specs=pl.BlockSpec((B, C, H, W), lambda i, offs_smem: (i, 0, 0, 0)),
        scratch_shapes=[
            pltpu.VMEM((2, C, H + 2 * pad, W + 2 * pad), jnp.float32),
        ],
    )

    out = pl.pallas_call(
        functools.partial(_shift_kernel, B=B, pad=pad, C=C, H=H, W=W),
        out_shape=jax.ShapeDtypeStruct((N, C, H, W), jnp.float32),
        grid_spec=grid_spec,
        compiler_params=pltpu.CompilerParams(
            dimension_semantics=("parallel",),
            vmem_limit_bytes=vmem_limit,
        ),
    )(offs_flat, x)
    return out, shift_int


if __name__ == "__main__":
    key = jax.random.PRNGKey(0)
    kx, ks = jax.random.split(key)
    N, C, H, W = 2, 4, 16, 16
    x = jax.random.normal(kx, (N, C, H, W), dtype=jnp.float32)

    out, shift_int = random_shifts_aug(x, ks)
    out = jax.block_until_ready(out)

    # Reference: grid_sample at integer-shifted pixel centers == crop of the
    # replicate-padded image at (shift_y, shift_x).
    xr = np.pad(np.asarray(x, np.float32),
                ((0, 0), (0, 0), (PAD, PAD), (PAD, PAD)), mode="edge")
    s = np.asarray(shift_int)
    ref = np.stack(
        [xr[i, :, s[i, 1]:s[i, 1] + H, s[i, 0]:s[i, 0] + W] for i in range(N)]
    )

    assert out.shape == (N, C, H, W) and out.dtype == jnp.float32
    np.testing.assert_allclose(np.asarray(out), ref, atol=1e-6, rtol=0)
    print("KERNEL_OK")
</pallas_src>

<mosaic_0001>
module attributes {stable_mosaic.version = 11 : i64} {
  func.func @_shift_kernel(%arg0: i32, %arg1: memref<4xi32, #tpu.memory_space<smem>>, %arg2: memref<1x4x16x16xf32, #tpu.memory_space<vmem>>, %arg3: memref<1x4x16x16xf32, #tpu.memory_space<vmem>>, %arg4: memref<2x4x22x22xf32, #tpu.memory_space<vmem>>) attributes {dimension_semantics = [#tpu.dimension_semantics<parallel>], iteration_bounds = array<i64: 2>, scalar_prefetch = 1 : i64, scratch_operands = 1 : i64, tpu.core_type = #tpu.core_type<tc>, window_params = [{transform_indices = @transform_0, window_bounds = array<i64: 1, 4, 16, 16>}, {transform_indices = @transform_1, window_bounds = array<i64: 1, 4, 16, 16>}]} {
    %c1_i32 = arith.constant 1 : i32
    %0 = arith.muli %arg0, %c1_i32 : i32
    %c0_i32 = arith.constant 0 : i32
    %1 = arith.addi %0, %c0_i32 : i32
    %c2_i32 = arith.constant 2 : i32
    %2 = arith.muli %c2_i32, %1 : i32
    %3 = arith.index_cast %2 : i32 to index
    %4 = memref.load %arg1[%3] : memref<4xi32, #tpu.memory_space<smem>>
    %c2_i32_0 = arith.constant 2 : i32
    %5 = arith.muli %c2_i32_0, %1 : i32
    %c1_i32_1 = arith.constant 1 : i32
    %6 = arith.addi %5, %c1_i32_1 : i32
    %7 = arith.index_cast %6 : i32 to index
    %8 = memref.load %arg1[%7] : memref<4xi32, #tpu.memory_space<smem>>
    %c0 = arith.constant 0 : index
    %c0_2 = arith.constant 0 : index
    %c0_3 = arith.constant 0 : index
    %c0_4 = arith.constant 0 : index
    %9 = vector.load %arg2[%c0, %c0_2, %c0_3, %c0_4] : memref<1x4x16x16xf32, #tpu.memory_space<vmem>>, vector<1x4x16x16xf32>
    %10 = vector.shape_cast %9 : vector<1x4x16x16xf32> to vector<4x16x16xf32>
    %11 = vector.extract_strided_slice %10 {offsets = [0, 0, 0], sizes = [4, 1, 16], strides = [1, 1, 1]} : vector<4x16x16xf32> to vector<4x1x16xf32>
    %12 = vector.shape_cast %11 : vector<4x1x16xf32> to vector<4x1x16xf32>
    %13 = vector.broadcast %12 : vector<4x1x16xf32> to vector<4x3x16xf32>
    %14 = vector.extract_strided_slice %10 {offsets = [0, 15, 0], sizes = [4, 1, 16], strides = [1, 1, 1]} : vector<4x16x16xf32> to vector<4x1x16xf32>
    %15 = vector.shape_cast %14 : vector<4x1x16xf32> to vector<4x1x16xf32>
    %16 = vector.broadcast %15 : vector<4x1x16xf32> to vector<4x3x16xf32>
    %17 = tpu.concatenate %13, %10, %16 in 1 : vector<4x3x16xf32>, vector<4x16x16xf32>, vector<4x3x16xf32> -> vector<4x22x16xf32>
    %18 = vector.extract_strided_slice %17 {offsets = [0, 0, 0], sizes = [4, 22, 1], strides = [1, 1, 1]} : vector<4x22x16xf32> to vector<4x22x1xf32>
    %19 = vector.shape_cast %18 : vector<4x22x1xf32> to vector<4x22x1xf32>
    %20 = vector.broadcast %19 : vector<4x22x1xf32> to vector<4x22x3xf32>
    %21 = vector.extract_strided_slice %17 {offsets = [0, 0, 15], sizes = [4, 22, 1], strides = [1, 1, 1]} : vector<4x22x16xf32> to vector<4x22x1xf32>
    %22 = vector.shape_cast %21 : vector<4x22x1xf32> to vector<4x22x1xf32>
    %23 = vector.broadcast %22 : vector<4x22x1xf32> to vector<4x22x3xf32>
    %24 = tpu.concatenate %20, %17, %23 in 2 : vector<4x22x3xf32>, vector<4x22x16xf32>, vector<4x22x3xf32> -> vector<4x22x22xf32>
    %c0_5 = arith.constant 0 : index
    %c0_6 = arith.constant 0 : index
    %c0_7 = arith.constant 0 : index
    %c0_8 = arith.constant 0 : index
    %25 = vector.load %arg4[%c0_5, %c0_6, %c0_7, %c0_8] : memref<2x4x22x22xf32, #tpu.memory_space<vmem>>, vector<1x4x22x22xf32>
    %26 = vector.shape_cast %25 : vector<1x4x22x22xf32> to vector<4x22x22xf32>
    %27 = vector.shape_cast %24 : vector<4x22x22xf32> to vector<1x4x22x22xf32>
    tpu.vector_store %arg4[%c0_5, %c0_6, %c0_7, %c0_8], %27 {strides = array<i32>} : memref<2x4x22x22xf32, #tpu.memory_space<vmem>>, vector<1x4x22x22xf32>,
    %c0_9 = arith.constant 0 : index
    %c0_10 = arith.constant 0 : index
    %28 = arith.index_cast %4 : i32 to index
    %c0_11 = arith.constant 0 : index
    %29 = vector.load %arg4[%c0_9, %c0_10, %28, %c0_11] : memref<2x4x22x22xf32, #tpu.memory_space<vmem>>, vector<1x4x16x22xf32>
    %30 = vector.shape_cast %29 : vector<1x4x16x22xf32> to vector<4x16x22xf32>
    %c0_i32_12 = arith.constant 0 : i32
    %31 = arith.shrsi %8, %c0_i32_12 : i32
    %c1_i32_13 = arith.constant 1 : i32
    %32 = arith.andi %31, %c1_i32_13 : i32
    %c1_i32_14 = arith.constant 1 : i32
    %33 = arith.subi %c1_i32_14, %32 : i32
    %c22_i32 = arith.constant 22 : i32
    %34 = arith.muli %c22_i32, %33 : i32
    %35 = tpu.iota {dimensions = array<i32: 2>} : vector<4x16x22xi32>
    %36 = vector.broadcast %34 : i32 to vector<4x16x22xi32>
    %37 = arith.cmpi sge, %35, %36 : vector<4x16x22xi32>
    %38 = vector.extract_strided_slice %30 {offsets = [0, 0, 1], sizes = [4, 16, 21], strides = [1, 1, 1]} : vector<4x16x22xf32> to vector<4x16x21xf32>
    %39 = vector.extract_strided_slice %30 {offsets = [0, 0, 0], sizes = [4, 16, 1], strides = [1, 1, 1]} : vector<4x16x22xf32> to vector<4x16x1xf32>
    %40 = tpu.concatenate %38, %39 in 2 : vector<4x16x21xf32>, vector<4x16x1xf32> -> vector<4x16x22xf32>
    %41 = arith.select %37, %40, %30 : vector<4x16x22xi1>, vector<4x16x22xf32>
    %c1_i32_15 = arith.constant 1 : i32
    %42 = arith.shrsi %8, %c1_i32_15 : i32
    %c1_i32_16 = arith.constant 1 : i32
    %43 = arith.andi %42, %c1_i32_16 : i32
    %c1_i32_17 = arith.constant 1 : i32
    %44 = arith.subi %c1_i32_17, %43 : i32
    %c22_i32_18 = arith.constant 22 : i32
    %45 = arith.muli %c22_i32_18, %44 : i32
    %46 = tpu.iota {dimensions = array<i32: 2>} : vector<4x16x22xi32>
    %47 = vector.broadcast %45 : i32 to vector<4x16x22xi32>
    %48 = arith.cmpi sge, %46, %47 : vector<4x16x22xi32>
    %49 = vector.extract_strided_slice %41 {offsets = [0, 0, 2], sizes = [4, 16, 20], strides = [1, 1, 1]} : vector<4x16x22xf32> to vector<4x16x20xf32>
    %50 = vector.extract_strided_slice %41 {offsets = [0, 0, 0], sizes = [4, 16, 2], strides = [1, 1, 1]} : vector<4x16x22xf32> to vector<4x16x2xf32>
    %51 = tpu.concatenate %49, %50 in 2 : vector<4x16x20xf32>, vector<4x16x2xf32> -> vector<4x16x22xf32>
    %52 = arith.select %48, %51, %41 : vector<4x16x22xi1>, vector<4x16x22xf32>
    %c2_i32_19 = arith.constant 2 : i32
    %53 = arith.shrsi %8, %c2_i32_19 : i32
    %c1_i32_20 = arith.constant 1 : i32
    %54 = arith.andi %53, %c1_i32_20 : i32
    %c1_i32_21 = arith.constant 1 : i32
    %55 = arith.subi %c1_i32_21, %54 : i32
    %c22_i32_22 = arith.constant 22 : i32
    %56 = arith.muli %c22_i32_22, %55 : i32
    %57 = tpu.iota {dimensions = array<i32: 2>} : vector<4x16x22xi32>
    %58 = vector.broadcast %56 : i32 to vector<4x16x22xi32>
    %59 = arith.cmpi sge, %57, %58 : vector<4x16x22xi32>
    %60 = vector.extract_strided_slice %52 {offsets = [0, 0, 4], sizes = [4, 16, 18], strides = [1, 1, 1]} : vector<4x16x22xf32> to vector<4x16x18xf32>
    %61 = vector.extract_strided_slice %52 {offsets = [0, 0, 0], sizes = [4, 16, 4], strides = [1, 1, 1]} : vector<4x16x22xf32> to vector<4x16x4xf32>
    %62 = tpu.concatenate %60, %61 in 2 : vector<4x16x18xf32>, vector<4x16x4xf32> -> vector<4x16x22xf32>
    %63 = arith.select %59, %62, %52 : vector<4x16x22xi1>, vector<4x16x22xf32>
    %64 = vector.extract_strided_slice %63 {offsets = [0, 0, 0], sizes = [4, 16, 16], strides = [1, 1, 1]} : vector<4x16x22xf32> to vector<4x16x16xf32>
    %c0_23 = arith.constant 0 : index
    %c0_24 = arith.constant 0 : index
    %c0_25 = arith.constant 0 : index
    %c0_26 = arith.constant 0 : index
    %65 = vector.load %arg3[%c0_23, %c0_24, %c0_25, %c0_26] : memref<1x4x16x16xf32, #tpu.memory_space<vmem>>, vector<1x4x16x16xf32>
    %66 = vector.shape_cast %65 : vector<1x4x16x16xf32> to vector<4x16x16xf32>
    %67 = vector.shape_cast %64 : vector<4x16x16xf32> to vector<1x4x16x16xf32>
    tpu.vector_store %arg3[%c0_23, %c0_24, %c0_25, %c0_26], %67 {strides = array<i32>} : memref<1x4x16x16xf32, #tpu.memory_space<vmem>>, vector<1x4x16x16xf32>,
    return
  }
  func.func @transform_0(%arg0: i32, %arg1: memref<4xi32, #tpu.memory_space<smem>>) -> (i32, i32, i32, i32) {
    %c0_i32 = arith.constant 0 : i32
    %c0_i32_0 = arith.constant 0 : i32
    %c0_i32_1 = arith.constant 0 : i32
    %c0_i32_2 = arith.constant 0 : i32
    return %arg0, %c0_i32, %c0_i32_0, %c0_i32_1 : i32, i32, i32, i32
  }
  func.func @transform_1(%arg0: i32, %arg1: memref<4xi32, #tpu.memory_space<smem>>) -> (i32, i32, i32, i32) {
    %c0_i32 = arith.constant 0 : i32
    %c0_i32_0 = arith.constant 0 : i32
    %c0_i32_1 = arith.constant 0 : i32
    %c0_i32_2 = arith.constant 0 : i32
    return %arg0, %c0_i32, %c0_i32_0, %c0_i32_1 : i32, i32, i32, i32
  }
}

</mosaic_0001>

<llo_original>
// kernel: tpu_custom_call.1
$region0: #{tpu_custom_call.1}
  #allocation0 [shape = 'u32[]', space=smem, size = 0x4, offset = 0x4, fixed_abs, tag = 'smem constant byte address 0x4 - core index']
  #allocation1 [shape = 'u32[144,128]{1,0:T(1,128)}', space=vmem, size = 0x12000, scoped, tag = 'internal scratch']
  #allocation2 [shape = 'f32[2,4,22,22]{3,2,1,0:T(8,128)}', space=vmem, size = 0x18000, scoped, tag = 'scratch operand']
  #allocation3 [shape = 's32[1]{0}', space=sflag, size = 0x4, scoped, tag = 'scoped memory for tpu_custom_call.1']
  #allocation4 [shape = 'u8[512]{0}', space=smem, size = 0x200, scoped, tag = 'prefetched SMEM operand 0']
  %s0 = inlined_call_operand.hbm [shape: s32[4], index: 0, kind: input, shape index: {}]
  %s1 = inlined_call_operand.hbm [shape: f32[2,4,16,16], index: 1, kind: input, shape index: {}]
  %s2 = inlined_call_operand.hbm [shape: f32[2,4,16,16], index: 2, kind: output, shape index: {}]
  %s3 = sld [smem:[#allocation0]]
  $region41: #{tpu_custom_call.1} parent=0
    _
  %s5 = ssub.s32 1, %s3
  %s6 = scalar_select 0, %s5, %s3
  %8 = dma.hbm_to_smem %s0, 16, [#allocation4], [#allocation3]
  %9 = dma.done [#allocation3], 16
  %10 = sfence
  $region1: #{tpu_custom_call.1} parent=0
    #allocation5 [shape = 'u8[65536]{0}', space=vmem, size = 0x10000, scoped, tag = 'input window, operand 1']
    #allocation6 [shape = 's32[2]{0}', space=sflag, size = 0x8, scoped, tag = 'scoped memory for tpu_custom_call.1']
    #allocation7 [shape = 's32[2]{0}', space=sflag, size = 0x8, scoped, tag = 'scoped memory for tpu_custom_call.1']
    #allocation8 [shape = 'u8[65536]{0}', space=vmem, size = 0x10000, scoped, tag = 'output window, operand 0']
    %11 = vsyncpa [#allocation6], 0
    %s12 = scalar_lea.sflag [#allocation6], 1
    %13 = vsyncpa %s12, 0
    %14 = vsyncpa [#allocation7], 0
    %s15 = scalar_lea.sflag [#allocation7], 1
    %16 = vsyncpa %s15, 0
    loop: start=0, step=1, limit=4
    $region2: #{tpu_custom_call.1} parent=1 // loop_pre_header
      _
    $region3: #{tpu_custom_call.1} parent=1 // loop_header
      %s18 = sphi 0, %s22
      %p19 = scmp.ge.s32.totalorder %s18, 4
      %s28 = sphi 0, %s30
      %s31 = sphi 0, %s28
      %s32 = sphi 0, %s31
      %s48 = sphi 0, %s32
      %s54 = sphi 0, %s56
      %s57 = sphi 0, %s54
      %s58 = sphi 0, %s57
      %s74 = sphi 0, %s58
    $region4: #{tpu_custom_call.1} parent=1 // loop_header_branch
      %21 = sbr.rel (%p19) target = $region8
    $region5: #{tpu_custom_call.1} parent=1 // loop_body
      %s23 = ssub.s32 %s18, 1
      %s24 = ssub.s32 %s18, 2
      %s25 = sadd.s32 %s18, 1
      %s26 = ssub.s32 %s18, %s25
      %p27 = scmp.eq.s32.totalorder %s26, 0
      %s29 = sadd.s32 %s28, 1
      %s30 = scalar_select %p27, %s28, %s29
      %p33 = pneg %p27
      %p34 = scmp.eq.s32.totalorder %s18, 1
      %p35 = por %p33, %p34
      %p36 = scmp.ne.s32.totalorder %s28, %s31
      %p37 = scmp.eq.s32.totalorder %s18, 0
      %p38 = por %p36, %p37
      %p39 = scmp.ne.s32.totalorder %s28, %s31
      %p40 = scmp.eq.s32.totalorder %s23, 1
      %p41 = por %p39, %p40
      %p42 = scmp.ne.s32.totalorder %s31, %s32
      %p43 = scmp.eq.s32.totalorder %s23, 0
      %p44 = por %p42, %p43
      %p45 = scmp.ne.s32.totalorder %s31, %s32
      %p46 = scmp.eq.s32.totalorder %s24, 1
      %p47 = por %p45, %p46
      %p49 = scmp.ne.s32.totalorder %s32, %s48
      %p50 = scmp.eq.s32.totalorder %s24, 0
      %p51 = por %p49, %p50
      %s52 = ssub.s32 %s18, %s25
      %p53 = scmp.eq.s32.totalorder %s52, 0
      %s55 = sadd.s32 %s54, 1
      %s56 = scalar_select %p53, %s54, %s55
      %p59 = pneg %p53
      %p60 = scmp.eq.s32.totalorder %s18, 1
      %p61 = por %p59, %p60
      %p62 = scmp.ne.s32.totalorder %s54, %s57
      %p63 = scmp.eq.s32.totalorder %s18, 0
      %p64 = por %p62, %p63
      %p65 = scmp.ne.s32.totalorder %s54, %s57
      %p66 = scmp.eq.s32.totalorder %s23, 1
      %p67 = por %p65, %p66
      %p68 = scmp.ne.s32.totalorder %s57, %s58
      %p69 = scmp.eq.s32.totalorder %s23, 0
      %p70 = por %p68, %p69
      %p71 = scmp.ne.s32.totalorder %s57, %s58
      %p72 = scmp.eq.s32.totalorder %s24, 1
      %p73 = por %p71, %p72
      %p75 = scmp.ne.s32.totalorder %s58, %s74
      %p76 = scmp.eq.s32.totalorder %s24, 0
      %p77 = por %p75, %p76
      %p78 = scmp.le.s32.totalorder 1, %s18
      %p79 = scmp.lt.s32.totalorder %s18, 3
      %p80 = pnand %p78, %p79
      %p81 = pneg %p80
      // Predicated region
      $region9: #{tpu_custom_call.1} parent=5 // pred_check
        _
      $region10: #{tpu_custom_call.1} parent=5 // pred_check_branch
        %83 = sbr.rel (%p80) target = $region12
      $region11: #{tpu_custom_call.1} parent=5 // pred_region
        %s84 = ssub.s32 %s18, 1
      $region12: #{tpu_custom_call.1} parent=5 // pred_fallthru
        _
      %p85 = scmp.lt.s32.totalorder %s18, 2
      // Predicated region
      $region13: #{tpu_custom_call.1} parent=5 // pred_check
        %p86 = pneg %p85
      $region14: #{tpu_custom_call.1} parent=5 // pred_check_branch
        %88 = sbr.rel (%p86) target = $region16
      $region15: #{tpu_custom_call.1} parent=5 // pred_region
        // Predicated region
        $region17: #{tpu_custom_call.1} parent=15 // pred_check
          %p89 = pneg %p38
        $region18: #{tpu_custom_call.1} parent=15 // pred_check_branch
          %91 = sbr.rel (%p89) target = $region20
        $region19: #{tpu_custom_call.1} parent=15 // pred_region
          %s92 = sand.u32 %s28, 1
          %s93 = scalar_lea.sflag [#allocation6], %s92
          %s94 = sand.u32 %s28, 1
          %s95 = smul.addr %s94, 64
          %s96 = scalar_lea.vmem [#allocation5], %s95
          %s98 = ssub.s32 1024, 1024
          %99 = vsyncadd %s93, %s98
          %s100 = smul.addr %s18, 8
          %s101 = smul.addr %s100, 128
          %s102 = scalar_lea.hbm %s1, %s101
          %s103 = sshll.u32 %s96, 4
          %s104 = int_to_ptr.vmem [resolvable:$true] %s103
          %109 = dma.hbm_to_vmem [thread:$0]  %s102, 1024, %s104, %s93, 128, 128, 8
        $region20: #{tpu_custom_call.1} parent=15 // pred_fallthru
          _
      $region16: #{tpu_custom_call.1} parent=5 // pred_fallthru
        _
      %p110 = scmp.le.s32.totalorder 1, %s18
      %p111 = scmp.lt.s32.totalorder %s18, 3
      %p112 = pnand %p110, %p111
      %p113 = pneg %p112
      // Predicated region
      $region21: #{tpu_custom_call.1} parent=5 // pred_check
        _
      $region22: #{tpu_custom_call.1} parent=5 // pred_check_branch
        %115 = sbr.rel (%p112) target = $region24
      $region23: #{tpu_custom_call.1} parent=5 // pred_region
        %s116 = ssub.s32 %s18, 1
        %s117 = sand.u32 %s31, 1
        %s118 = scalar_lea.sflag [#allocation6], %s117
        %s119 = sand.u32 %s31, 1
        %s120 = smul.addr %s119, 64
        %s121 = scalar_lea.vmem [#allocation5], %s120
        // Predicated region
        $region25: #{tpu_custom_call.1} parent=23 // pred_check
          %p122 = pneg %p44
        $region26: #{tpu_custom_call.1} parent=23 // pred_check_branch
          %124 = sbr.rel (%p122) target = $region28
        $region27: #{tpu_custom_call.1} parent=23 // pred_region
          %125 = dma.done %s118, 1024
        $region28: #{tpu_custom_call.1} parent=23 // pred_fallthru
          _
        %s126 = sand.u32 %s31, 1
        %s127 = scalar_lea.sflag [#allocation6], %s126
        %s128 = sand.u32 %s31, 1
        %s129 = smul.addr %s128, 64
        %s130 = scalar_lea.vmem [#allocation5], %s129
        %p131 = pneg %p44
        %p132 = pneg %p41
        %p133 = pneg %p70
        %p134 = pneg %p67
        %s135 = sand.u32 %s57, 1
        %s136 = scalar_lea.sflag [#allocation7], %s135
        %s137 = sand.u32 %s57, 1
        %s138 = smul.addr %s137, 64
        %s139 = scalar_lea.vmem [#allocation8], %s138
        %s140 = smul.u32 %s23, 2
        %s141 = sld [smem:[#allocation4 + %s140]]
        %s142 = sadd.s32 %s140, 1
        %s143 = sld [smem:[#allocation4 + %s142]]
        %v144 = vld [vmem:[%s121] sm:$0xff]
        %v145 = vld [vmem:[%s121 + $0x8] sm:$0xff]
        %v146 = vld [vmem:[%s121 + $0x10] sm:$0xff]
        %v147 = vld [vmem:[%s121 + $0x18] sm:$0xff]
        %v148 = vld [vmem:[%s121 + $0x20] sm:$0xff]
        %v149 = vld [vmem:[%s121 + $0x28] sm:$0xff]
        %v150 = vld [vmem:[%s121 + $0x30] sm:$0xff]
        %v151 = vld [vmem:[%s121 + $0x38] sm:$0xff]
        %v152 = vlaneseq
        %v153 = vshrl.u32 %v152, 7
        %v154 = vsub.s32 0, %v153
        %v155 = vrot.slane %v144, %v154
        %v156 = vlaneseq
        %v157 = vshrl.u32 %v156, 7
        %v158 = vsub.s32 0, %v157
        %v159 = vrot.slane %v146, %v158
        %v160 = vlaneseq
        %v161 = vshrl.u32 %v160, 7
        %v162 = vsub.s32 0, %v161
        %v163 = vrot.slane %v148, %v162
        %v164 = vlaneseq
        %v165 = vshrl.u32 %v164, 7
        %v166 = vsub.s32 0, %v165
        %v167 = vrot.slane %v150, %v166
        %v168 = vlaneseq
        %v169 = vshrl.u32 %v168, 7
        %v170 = vsub.s32 7, %v169
        %v171 = vrot.slane %v145, %v170
        %v172 = vlaneseq
        %v173 = vshrl.u32 %v172, 7
        %v174 = vsub.s32 7, %v173
        %v175 = vrot.slane %v147, %v174
        %v176 = vlaneseq
        %v177 = vshrl.u32 %v176, 7
        %v178 = vsub.s32 7, %v177
        %v179 = vrot.slane %v149, %v178
        %v180 = vlaneseq
        %v181 = vshrl.u32 %v180, 7
        %v182 = vsub.s32 7, %v181
        %v183 = vrot.slane %v151, %v182
        %vm192 = vcmask 1042432
        %v193 = vrot.slane %v144, 5
        %v194 = vrot.slane %v145, 5
        %v195 = vsel %vm192, %v193, %v194
        %v196 = vrot.slane %v146, 5
        %v197 = vrot.slane %v147, 5
        %v198 = vsel %vm192, %v196, %v197
        %v199 = vrot.slane %v148, 5
        %v200 = vrot.slane %v149, 5
        %v201 = vsel %vm192, %v199, %v200
        %v202 = vrot.slane %v150, 5
        %v203 = vrot.slane %v151, 5
        %v204 = vsel %vm192, %v202, %v203
        %v213 = vsel %vm192, %v155, %v193
        %v214 = vsel %vm192, %v159, %v196
        %v215 = vsel %vm192, %v163, %v199
        %v216 = vsel %vm192, %v167, %v202
        %v217 = vsel %vm192, %v194, %v171
        %v218 = vsel %vm192, %v197, %v175
        %v219 = vsel %vm192, %v200, %v179
        %v220 = vsel %vm192, %v203, %v183
        %222 = vset.pattern.permute.xlu0 0
        %223 = vperm.xlu0 %222, %v213
        %v224 = vpop.permute.xlu0 %223
        %226 = vset.pattern.permute.xlu0 0
        %227 = vperm.xlu0 %226, %v195
        %v228 = vpop.permute.xlu0 %227
        %231 = vset.pattern.permute.xlu0 0
        %232 = vperm.xlu0 %231, %v217
        %v233 = vpop.permute.xlu0 %232
        %236 = vset.pattern.permute.xlu0 0
        %237 = vperm.xlu0 %236, %v214
        %v238 = vpop.permute.xlu0 %237
        %240 = vset.pattern.permute.xlu0 0
        %241 = vperm.xlu0 %240, %v198
        %v242 = vpop.permute.xlu0 %241
        %245 = vset.pattern.permute.xlu0 0
        %246 = vperm.xlu0 %245, %v218
        %v247 = vpop.permute.xlu0 %246
        %250 = vset.pattern.permute.xlu0 0
        %251 = vperm.xlu0 %250, %v215
        %v252 = vpop.permute.xlu0 %251
        %254 = vset.pattern.permute.xlu0 0
        %255 = vperm.xlu0 %254, %v201
        %v256 = vpop.permute.xlu0 %255
        %259 = vset.pattern.permute.xlu0 0
        %260 = vperm.xlu0 %259, %v219
        %v261 = vpop.permute.xlu0 %260
        %264 = vset.pattern.permute.xlu0 0
        %265 = vperm.xlu0 %264, %v216
        %v266 = vpop.permute.xlu0 %265
        %268 = vset.pattern.permute.xlu0 0
        %269 = vperm.xlu0 %268, %v204
        %v270 = vpop.permute.xlu0 %269
        %273 = vset.pattern.permute.xlu0 0
        %274 = vperm.xlu0 %273, %v220
        %v275 = vpop.permute.xlu0 %274
        %277 = vset.pattern.permute.xlu0 15
        %278 = vperm.xlu0 %277, %v213
        %v279 = vpop.permute.xlu0 %278
        %281 = vset.pattern.permute.xlu0 15
        %282 = vperm.xlu0 %281, %v195
        %v283 = vpop.permute.xlu0 %282
        %285 = vset.pattern.permute.xlu0 15
        %286 = vperm.xlu0 %285, %v217
        %v287 = vpop.permute.xlu0 %286
        %289 = vset.pattern.permute.xlu0 15
        %290 = vperm.xlu0 %289, %v214
        %v291 = vpop.permute.xlu0 %290
        %293 = vset.pattern.permute.xlu0 15
        %294 = vperm.xlu0 %293, %v198
        %v295 = vpop.permute.xlu0 %294
        %297 = vset.pattern.permute.xlu0 15
        %298 = vperm.xlu0 %297, %v218
        %v299 = vpop.permute.xlu0 %298
        %301 = vset.pattern.permute.xlu0 15
        %302 = vperm.xlu0 %301, %v215
        %v303 = vpop.permute.xlu0 %302
        %305 = vset.pattern.permute.xlu0 15
        %306 = vperm.xlu0 %305, %v201
        %v307 = vpop.permute.xlu0 %306
        %309 = vset.pattern.permute.xlu0 15
        %310 = vperm.xlu0 %309, %v219
        %v311 = vpop.permute.xlu0 %310
        %313 = vset.pattern.permute.xlu0 15
        %314 = vperm.xlu0 %313, %v216
        %v315 = vpop.permute.xlu0 %314
        %317 = vset.pattern.permute.xlu0 15
        %318 = vperm.xlu0 %317, %v204
        %v319 = vpop.permute.xlu0 %318
        %321 = vset.pattern.permute.xlu0 15
        %322 = vperm.xlu0 %321, %v220
        %v323 = vpop.permute.xlu0 %322
        %325 = vrot.lane.b32.xlu0 %v213, 3
        %v326 = vpop.permute.xlu0 %325
        %327 = vrot.lane.b32.xlu0 %v195, 3
        %v328 = vpop.permute.xlu0 %327
        %329 = vrot.lane.b32.xlu0 %v217, 3
        %v330 = vpop.permute.xlu0 %329
        %331 = vrot.lane.b32.xlu0 %v214, 3
        %v332 = vpop.permute.xlu0 %331
        %333 = vrot.lane.b32.xlu0 %v198, 3
        %v334 = vpop.permute.xlu0 %333
        %335 = vrot.lane.b32.xlu0 %v218, 3
        %v336 = vpop.permute.xlu0 %335
        %337 = vrot.lane.b32.xlu0 %v215, 3
        %v338 = vpop.permute.xlu0 %337
        %339 = vrot.lane.b32.xlu0 %v201, 3
        %v340 = vpop.permute.xlu0 %339
        %341 = vrot.lane.b32.xlu0 %v219, 3
        %v342 = vpop.permute.xlu0 %341
        %343 = vrot.lane.b32.xlu0 %v216, 3
        %v344 = vpop.permute.xlu0 %343
        %345 = vrot.lane.b32.xlu0 %v204, 3
        %v346 = vpop.permute.xlu0 %345
        %347 = vrot.lane.b32.xlu0 %v220, 3
        %v348 = vpop.permute.xlu0 %347
        %vm361 = vcmask 23552
        %v362 = vsel %vm361, %v224, %v326
        %v363 = vsel %vm361, %v228, %v328
        %v364 = vsel %vm361, %v233, %v330
        %v365 = vsel %vm361, %v238, %v332
        %v366 = vsel %vm361, %v242, %v334
        %v367 = vsel %vm361, %v247, %v336
        %v368 = vsel %vm361, %v252, %v338
        %v369 = vsel %vm361, %v256, %v340
        %v370 = vsel %vm361, %v261, %v342
        %v371 = vsel %vm361, %v266, %v344
        %v372 = vsel %vm361, %v270, %v346
        %v373 = vsel %vm361, %v275, %v348
        %vm374 = vcmask 154624
        %v375 = vsel %vm374, %v362, %v279
        %v376 = vsel %vm374, %v363, %v283
        %v377 = vsel %vm374, %v364, %v287
        %v378 = vsel %vm374, %v365, %v291
        %v379 = vsel %vm374, %v366, %v295
        %v380 = vsel %vm374, %v367, %v299
        %v381 = vsel %vm374, %v368, %v303
        %v382 = vsel %vm374, %v369, %v307
        %v383 = vsel %vm374, %v370, %v311
        %v384 = vsel %vm374, %v371, %v315
        %v385 = vsel %vm374, %v372, %v319
        %v386 = vsel %vm374, %v373, %v323
        %vm387 = vcmask 179200
        %388 = vst.msk [vmem:[#allocation2] sm:$0xff] %vm387, %v375
        %389 = vst.msk [vmem:[#allocation2 + $0x8] sm:$0xff] %vm387, %v376
        %vm390 = vcmask 177152
        %391 = vst.msk [vmem:[#allocation2 + $0x10] sm:$0x3f] %vm390, %v377
        %392 = vst.msk [vmem:[#allocation2 + $0x18] sm:$0xff] %vm387, %v378
        %393 = vst.msk [vmem:[#allocation2 + $0x20] sm:$0xff] %vm387, %v379
        %394 = vst.msk [vmem:[#allocation2 + $0x28] sm:$0x3f] %vm390, %v380
        %395 = vst.msk [vmem:[#allocation2 + $0x30] sm:$0xff] %vm387, %v381
        %396 = vst.msk [vmem:[#allocation2 + $0x38] sm:$0xff] %vm387, %v382
        %397 = vst.msk [vmem:[#allocation2 + $0x40] sm:$0x3f] %vm390, %v383
        %398 = vst.msk [vmem:[#allocation2 + $0x48] sm:$0xff] %vm387, %v384
        %399 = vst.msk [vmem:[#allocation2 + $0x50] sm:$0xff] %vm387, %v385
        %400 = vst.msk [vmem:[#allocation2 + $0x58] sm:$0x3f] %vm390, %v386
        %s401 = scalar_lea.vmem [#allocation2], %s141
        %v402 = vld [vmem:[%s401] sm:$0xff]
        %v403 = vld [vmem:[%s401 + $0x8] sm:$0xff]
        %v404 = vld [vmem:[%s401 + $0x18] sm:$0xff]
        %v405 = vld [vmem:[%s401 + $0x20] sm:$0xff]
        %v406 = vld [vmem:[%s401 + $0x30] sm:$0xff]
        %v407 = vld [vmem:[%s401 + $0x38] sm:$0xff]
        %v408 = vld [vmem:[%s401 + $0x48] sm:$0xff]
        %v409 = vld [vmem:[%s401 + $0x50] sm:$0xff]
        %s410 = sand.u32 %s143, 1
        %s411 = ssub.s32 1, %s410
        %s412 = smul.u32 %s411, 22
        %v413 = vlaneseq
        %v414 = vand.u32 %v413, 127
        %v415 = vstv %s412
        %vm416 = vcmp.ge.s32.totalorder %v414, %v415
        %425 = vrot.lane.b32.xlu0 %v402, 127
        %v426 = vpop.permute.xlu0 %425
        %427 = vrot.lane.b32.xlu0 %v403, 127
        %v428 = vpop.permute.xlu0 %427
        %429 = vrot.lane.b32.xlu0 %v404, 127
        %v430 = vpop.permute.xlu0 %429
        %431 = vrot.lane.b32.xlu0 %v405, 127
        %v432 = vpop.permute.xlu0 %431
        %433 = vrot.lane.b32.xlu0 %v406, 127
        %v434 = vpop.permute.xlu0 %433
        %435 = vrot.lane.b32.xlu0 %v407, 127
        %v436 = vpop.permute.xlu0 %435
        %437 = vrot.lane.b32.xlu0 %v408, 127
        %v438 = vpop.permute.xlu0 %437
        %439 = vrot.lane.b32.xlu0 %v409, 127
        %v440 = vpop.permute.xlu0 %439
        %449 = vrot.lane.b32.xlu0 %v402, 21
        %v450 = vpop.permute.xlu0 %449
        %451 = vrot.lane.b32.xlu0 %v403, 21
        %v452 = vpop.permute.xlu0 %451
        %453 = vrot.lane.b32.xlu0 %v404, 21
        %v454 = vpop.permute.xlu0 %453
        %455 = vrot.lane.b32.xlu0 %v405, 21
        %v456 = vpop.permute.xlu0 %455
        %457 = vrot.lane.b32.xlu0 %v406, 21
        %v458 = vpop.permute.xlu0 %457
        %459 = vrot.lane.b32.xlu0 %v407, 21
        %v460 = vpop.permute.xlu0 %459
        %461 = vrot.lane.b32.xlu0 %v408, 21
        %v462 = vpop.permute.xlu0 %461
        %463 = vrot.lane.b32.xlu0 %v409, 21
        %v464 = vpop.permute.xlu0 %463
        %vm473 = vcmask 171008
        %v474 = vsel %vm473, %v426, %v450
        %v475 = vsel %vm473, %v428, %v452
        %v476 = vsel %vm473, %v430, %v454
        %v477 = vsel %vm473, %v432, %v456
        %v478 = vsel %vm473, %v434, %v458
        %v479 = vsel %vm473, %v436, %v460
        %v480 = vsel %vm473, %v438, %v462
        %v481 = vsel %vm473, %v440, %v464
        %v482 = vsel %vm416, %v474, %v402
        %v483 = vsel %vm416, %v475, %v403
        %v484 = vsel %vm416, %v476, %v404
        %v485 = vsel %vm416, %v477, %v405
        %v486 = vsel %vm416, %v478, %v406
        %v487 = vsel %vm416, %v479, %v407
        %v488 = vsel %vm416, %v480, %v408
        %v489 = vsel %vm416, %v481, %v409
        %s490 = sshra.s32 %s143, 1
        %s491 = sand.u32 %s490, 1
        %s492 = ssub.s32 1, %s491
        %s493 = smul.u32 %s492, 22
        %v494 = vstv %s493
        %vm495 = vcmp.ge.s32.totalorder %v414, %v494
        %504 = vrot.lane.b32.xlu0 %v482, 126
        %v505 = vpop.permute.xlu0 %504
        %506 = vrot.lane.b32.xlu0 %v483, 126
        %v507 = vpop.permute.xlu0 %506
        %508 = vrot.lane.b32.xlu0 %v484, 126
        %v509 = vpop.permute.xlu0 %508
        %510 = vrot.lane.b32.xlu0 %v485, 126
        %v511 = vpop.permute.xlu0 %510
        %512 = vrot.lane.b32.xlu0 %v486, 126
        %v513 = vpop.permute.xlu0 %512
        %514 = vrot.lane.b32.xlu0 %v487, 126
        %v515 = vpop.permute.xlu0 %514
        %516 = vrot.lane.b32.xlu0 %v488, 126
        %v517 = vpop.permute.xlu0 %516
        %518 = vrot.lane.b32.xlu0 %v489, 126
        %v519 = vpop.permute.xlu0 %518
        %528 = vrot.lane.b32.xlu0 %v482, 20
        %v529 = vpop.permute.xlu0 %528
        %530 = vrot.lane.b32.xlu0 %v483, 20
        %v531 = vpop.permute.xlu0 %530
        %532 = vrot.lane.b32.xlu0 %v484, 20
        %v533 = vpop.permute.xlu0 %532
        %534 = vrot.lane.b32.xlu0 %v485, 20
        %v535 = vpop.permute.xlu0 %534
        %536 = vrot.lane.b32.xlu0 %v486, 20
        %v537 = vpop.permute.xlu0 %536
        %538 = vrot.lane.b32.xlu0 %v487, 20
        %v539 = vpop.permute.xlu0 %538
        %540 = vrot.lane.b32.xlu0 %v488, 20
        %v541 = vpop.permute.xlu0 %540
        %542 = vrot.lane.b32.xlu0 %v489, 20
        %v543 = vpop.permute.xlu0 %542
        %vm552 = vcmask 162816
        %v553 = vsel %vm552, %v505, %v529
        %v554 = vsel %vm552, %v507, %v531
        %v555 = vsel %vm552, %v509, %v533
        %v556 = vsel %vm552, %v511, %v535
        %v557 = vsel %vm552, %v513, %v537
        %v558 = vsel %vm552, %v515, %v539
        %v559 = vsel %vm552, %v517, %v541
        %v560 = vsel %vm552, %v519, %v543
        %v561 = vsel %vm495, %v553, %v482
        %v562 = vsel %vm495, %v554, %v483
        %v563 = vsel %vm495, %v555, %v484
        %v564 = vsel %vm495, %v556, %v485
        %v565 = vsel %vm495, %v557, %v486
        %v566 = vsel %vm495, %v558, %v487
        %v567 = vsel %vm495, %v559, %v488
        %v568 = vsel %vm495, %v560, %v489
        %s569 = sshra.s32 %s143, 2
        %s570 = sand.u32 %s569, 1
        %s571 = ssub.s32 1, %s570
        %s572 = smul.u32 %s571, 22
        %v573 = vstv %s572
        %vm574 = vcmp.ge.s32.totalorder %v414, %v573
        %583 = vrot.lane.b32.xlu0 %v561, 124
        %v584 = vpop.permute.xlu0 %583
        %585 = vrot.lane.b32.xlu0 %v562, 124
        %v586 = vpop.permute.xlu0 %585
        %587 = vrot.lane.b32.xlu0 %v563, 124
        %v588 = vpop.permute.xlu0 %587
        %589 = vrot.lane.b32.xlu0 %v564, 124
        %v590 = vpop.permute.xlu0 %589
        %591 = vrot.lane.b32.xlu0 %v565, 124
        %v592 = vpop.permute.xlu0 %591
        %593 = vrot.lane.b32.xlu0 %v566, 124
        %v594 = vpop.permute.xlu0 %593
        %595 = vrot.lane.b32.xlu0 %v567, 124
        %v596 = vpop.permute.xlu0 %595
        %597 = vrot.lane.b32.xlu0 %v568, 124
        %v598 = vpop.permute.xlu0 %597
        %607 = vrot.lane.b32.xlu0 %v561, 18
        %v608 = vpop.permute.xlu0 %607
        %609 = vrot.lane.b32.xlu0 %v562, 18
        %v610 = vpop.permute.xlu0 %609
        %611 = vrot.lane.b32.xlu0 %v563, 18
        %v612 = vpop.permute.xlu0 %611
        %613 = vrot.lane.b32.xlu0 %v564, 18
        %v614 = vpop.permute.xlu0 %613
        %615 = vrot.lane.b32.xlu0 %v565, 18
        %v616 = vpop.permute.xlu0 %615
        %617 = vrot.lane.b32.xlu0 %v566, 18
        %v618 = vpop.permute.xlu0 %617
        %619 = vrot.lane.b32.xlu0 %v567, 18
        %v620 = vpop.permute.xlu0 %619
        %621 = vrot.lane.b32.xlu0 %v568, 18
        %v622 = vpop.permute.xlu0 %621
        %vm631 = vcmask 146432
        %v632 = vsel %vm631, %v584, %v608
        %v633 = vsel %vm631, %v586, %v610
        %v634 = vsel %vm631, %v588, %v612
        %v635 = vsel %vm631, %v590, %v614
        %v636 = vsel %vm631, %v592, %v616
        %v637 = vsel %vm631, %v594, %v618
        %v638 = vsel %vm631, %v596, %v620
        %v639 = vsel %vm631, %v598, %v622
        %v640 = vsel %vm574, %v632, %v561
        %v641 = vsel %vm574, %v633, %v562
        %v642 = vsel %vm574, %v634, %v563
        %v643 = vsel %vm574, %v635, %v564
        %v644 = vsel %vm574, %v636, %v565
        %v645 = vsel %vm574, %v637, %v566
        %v646 = vsel %vm574, %v638, %v567
        %v647 = vsel %vm574, %v639, %v568
        %vm648 = vcmask 130048
        %649 = vst.msk [vmem:[%s139] sm:$0xff] %vm648, %v640
        %650 = vst.msk [vmem:[%s139 + $0x8] sm:$0xff] %vm648, %v641
        %651 = vst.msk [vmem:[%s139 + $0x10] sm:$0xff] %vm648, %v642
        %652 = vst.msk [vmem:[%s139 + $0x18] sm:$0xff] %vm648, %v643
        %653 = vst.msk [vmem:[%s139 + $0x20] sm:$0xff] %vm648, %v644
        %654 = vst.msk [vmem:[%s139 + $0x28] sm:$0xff] %vm648, %v645
        %655 = vst.msk [vmem:[%s139 + $0x30] sm:$0xff] %vm648, %v646
        %656 = vst.msk [vmem:[%s139 + $0x38] sm:$0xff] %vm648, %v647
        %s657 = sand.u32 %s57, 1
        %s658 = scalar_lea.sflag [#allocation7], %s657
        %s659 = sand.u32 %s57, 1
        %s660 = smul.addr %s659, 64
        %s661 = scalar_lea.vmem [#allocation8], %s660
        // Predicated region
        $region29: #{tpu_custom_call.1} parent=23 // pred_check
          %p662 = pneg %p67
        $region30: #{tpu_custom_call.1} parent=23 // pred_check_branch
          %664 = sbr.rel (%p662) target = $region32
        $region31: #{tpu_custom_call.1} parent=23 // pred_region
          %s666 = ssub.s32 1024, 1024
          %667 = vsyncadd %s658, %s666
          %s668 = smul.addr %s23, 8
          %s669 = smul.addr %s668, 128
          %s670 = scalar_lea.hbm %s2, %s669
          %s671 = sshll.u32 %s661, 4
          %s672 = int_to_ptr.vmem [resolvable:$true] %s671
          %677 = dma.vmem_to_hbm [thread:$0]  %s672, 1024, %s670, %s658, 128, 128, 8
        $region32: #{tpu_custom_call.1} parent=23 // pred_fallthru
          _
      $region24: #{tpu_custom_call.1} parent=5 // pred_fallthru
        _
      %p678 = scmp.le.s32.totalorder 2, %s18
      // Predicated region
      $region33: #{tpu_custom_call.1} parent=5 // pred_check
        %p679 = pneg %p678
      $region34: #{tpu_custom_call.1} parent=5 // pred_check_branch
        %681 = sbr.rel (%p679) target = $region36
      $region35: #{tpu_custom_call.1} parent=5 // pred_region
        %s682 = ssub.s32 %s18, 2
        // Predicated region
        $region37: #{tpu_custom_call.1} parent=35 // pred_check
          %p683 = pneg %p73
        $region38: #{tpu_custom_call.1} parent=35 // pred_check_branch
          %685 = sbr.rel (%p683) target = $region40
        $region39: #{tpu_custom_call.1} parent=35 // pred_region
          %s686 = sand.u32 %s58, 1
          %s687 = scalar_lea.sflag [#allocation7], %s686
          %s688 = sand.u32 %s58, 1
          %s689 = smul.addr %s688, 64
          %s690 = scalar_lea.vmem [#allocation8], %s689
          %691 = dma.done %s687, 1024
        $region40: #{tpu_custom_call.1} parent=35 // pred_fallthru
          _
      $region36: #{tpu_custom_call.1} parent=5 // pred_fallthru
        _
    $region6: #{tpu_custom_call.1} parent=1 // loop_footer
      %s22 = sadd.s32 1, %s18
    $region7: #{tpu_custom_call.1} parent=1 // loop_footer_branch
      %17 = sbr.rel target = $region3
    $region8: #{tpu_custom_call.1} parent=1 // loop_exit
      _
    %692 = vsyncpa [#allocation6], 1
    %s693 = scalar_lea.sflag [#allocation6], 1
    %694 = vsyncpa %s693, 1
    %695 = vsyncpa [#allocation7], 1
    %s696 = scalar_lea.sflag [#allocation7], 1
    %697 = vsyncpa %s696, 1

</llo_original>
